<compile_context>
chip_gen: v7x
topology: tpu7x:2x2x1
jax: 0.10.0
libtpu: 0.0.40
codegen_flags: <defaults>
</compile_context>

<pallas_src>
import numpy as np
import jax
import jax.numpy as jnp
from jax.experimental import pallas as pl
from jax.experimental.pallas import tpu as pltpu


def calculate_normalized_laplacian(adj):
    """Dense equivalent of the scipy-based normalized laplacian:
    L = D^{-1/2} (A + I)^T D^{-1/2}  (exactly the reference formula), inf-safe."""
    adj = adj + jnp.eye(adj.shape[0], dtype=adj.dtype)
    d = adj.sum(axis=1)
    safe_d = jnp.where(d > 0, d, 1.0)
    d_inv_sqrt = jnp.where(d > 0, jax.lax.rsqrt(safe_d), 0.0)
    # adj.dot(diag(dinv)).T.dot(diag(dinv))
    return (adj * d_inv_sqrt[None, :]).T * d_inv_sqrt[None, :]


def _make_tgcn_kernel(num_nodes, input_dim, num_units, batch_tile):
    """Build the fused TGCN GRU-cell kernel for a fixed (N, D, U, batch_tile)."""
    N, D, U, TB = num_nodes, input_dim, num_units, batch_tile

    def kernel(adj_ref, x_ref, h_ref, w0x_ref, w0h_ref, w1x_ref, w1h_ref,
               b0_ref, b1_ref, out_ref):
        adj = adj_ref[...]                          # (N, N)      matmul dtype (bf16)
        x = x_ref[...]                              # (N, TB*D)   matmul dtype
        h = h_ref[...]                              # (N, TB*U)   f32 (recurrent state)
        mmdt = adj.dtype

        # ---- stage 1: graph convolutions over nodes, batch folded on lanes ----
        # Wide MXU matmuls; A is reused for x, h and (later) r*h.
        ax = jnp.dot(adj, x, preferred_element_type=jnp.float32)               # (N, TB*D)
        ah = jnp.dot(adj, h.astype(mmdt), preferred_element_type=jnp.float32)  # (N, TB*U)
        ax_m = ax.astype(mmdt)       # bf16 only where it feeds the MXU again
        ah_m = ah.astype(mmdt)

        w0x = w0x_ref[...]           # (D, 2U)  matmul dtype
        w0h = w0h_ref[...]           # (U, 2U)
        w1x = w1x_ref[...]           # (D, U)
        w1h = w1h_ref[...]           # (U, U)
        b0 = b0_ref[...]             # (1, 2U)  f32
        b1 = b1_ref[...]             # (1, U)   f32

        # ---- stage 2: per-batch merged gate matmuls on static lane slices ----
        # No block-diagonal weights: exact FLOPs, weights stay (F, 2U)/(F, U).
        u_list, h_list, rh_list = [], [], []
        for b in range(TB):
            ax_b = ax_m[:, b * D:(b + 1) * D]       # (N, D)
            ah_b = ah_m[:, b * U:(b + 1) * U]       # (N, U)
            h_b = h[:, b * U:(b + 1) * U]           # (N, U) f32
            gates = jax.nn.sigmoid(
                jnp.dot(ax_b, w0x, preferred_element_type=jnp.float32)
                + jnp.dot(ah_b, w0h, preferred_element_type=jnp.float32)
                + b0)                               # (N, 2U) f32, r|u merged
            r_b = gates[:, :U]
            u_b = gates[:, U:]
            u_list.append(u_b)
            h_list.append(h_b)
            rh_list.append(r_b * h_b)               # f32

        rh = jnp.concatenate(rh_list, axis=1).astype(mmdt)   # (N, TB*U)

        # ---- stage 3: candidate graph conv (wide) + per-batch candidate matmul ----
        arh = jnp.dot(adj, rh, preferred_element_type=jnp.float32)             # (N, TB*U)
        arh_m = arh.astype(mmdt)

        out_list = []
        for b in range(TB):
            c_b = jnp.tanh(
                jnp.dot(ax_m[:, b * D:(b + 1) * D], w1x,
                        preferred_element_type=jnp.float32)
                + jnp.dot(arh_m[:, b * U:(b + 1) * U], w1h,
                          preferred_element_type=jnp.float32)
                + b1)                               # (N, U) f32
            u_b = u_list[b]
            out_list.append(u_b * h_list[b] + (1.0 - u_b) * c_b)

        # ---- GRU state update: single dense lane-folded store (aliases the state) ----
        out_ref[...] = jnp.concatenate(out_list, axis=1)

    return kernel


def prepare_tgcn_params(adj_norm, w0, b0, w1, b1, *, num_units, input_dim,
                        matmul_dtype=jnp.bfloat16):
    """One-time parameter preparation (weight splits, dtype casts, bias reshapes).

    Call this ONCE outside the per-timestep loop; in an RNN scan the returned dict is
    reused every step, so no weight re-splitting / re-casting / re-streaming per step.
    """
    D, U = input_dim, num_units
    assert w0.shape == (D + U, 2 * U) and w1.shape == (D + U, U)
    return dict(
        adj=adj_norm.astype(matmul_dtype),
        w0x=w0[:D].astype(matmul_dtype),        # (D, 2U) -> multiplies A@x
        w0h=w0[D:].astype(matmul_dtype),        # (U, 2U) -> multiplies A@h
        w1x=w1[:D].astype(matmul_dtype),        # (D, U)
        w1h=w1[D:].astype(matmul_dtype),        # (U, U)
        b0=b0.reshape(1, 2 * U).astype(jnp.float32),
        b1=b1.reshape(1, U).astype(jnp.float32),
    )


def fold_to_node_major(flat, num_nodes, feat):
    """(B, N*F) -> node-major lane-folded slab (N, B*F).  Sequence-boundary only."""
    b = flat.shape[0]
    return (flat.reshape(b, num_nodes, feat)
            .transpose(1, 0, 2).reshape(num_nodes, b * feat))


def unfold_from_node_major(slab, num_nodes, feat):
    """(N, B*F) -> (B, N*F).  Sequence-boundary only."""
    b = slab.shape[1] // feat
    return (slab.reshape(num_nodes, b, feat)
            .transpose(1, 0, 2).reshape(b, num_nodes * feat))


def tgcn_cell_step(params, x_nf, h_nf, *, num_nodes, num_units, input_dim,
                   batch_tile=None):
    """One GRU-GCN step in the persistent folded layout (scan-friendly).

    x_nf: (N, B*D) in the matmul dtype; h_nf: (N, B*U) float32 (recurrent state).
    Returns the new state, (N, B*U) float32, aliased in place onto h_nf's buffer.
    """
    N, D, U = num_nodes, input_dim, num_units
    B = x_nf.shape[1] // D
    if batch_tile is None:
        batch_tile = B
    assert B % batch_tile == 0
    # Pallas lane blocks must be full-extent or multiples of 128; at production sizes
    # choose batch_tile so batch_tile*D and batch_tile*U are multiples of 128.
    assert batch_tile == B or ((batch_tile * D) % 128 == 0 and (batch_tile * U) % 128 == 0)
    n_tiles = B // batch_tile
    mm_bytes = jnp.dtype(x_nf.dtype).itemsize

    # Advisory cost estimate for the XLA scheduler.
    flops = int(2 * N * N * B * (D + 2 * U)            # A@x, A@h, A@(r*h)
                + 2 * B * N * (D + U) * 3 * U)         # gate + candidate feature matmuls
    transcendentals = int(B * N * 3 * U)               # sigmoid(2U) + tanh(U) per node/batch
    bytes_accessed = int(N * N * mm_bytes              # adjacency
                         + N * B * D * mm_bytes        # x slab
                         + (D + U) * 3 * U * mm_bytes  # w0 + w1
                         + 3 * U * 4                   # biases
                         + 2 * N * B * U * 4)          # h in + new state out (f32)

    kernel = _make_tgcn_kernel(N, D, U, batch_tile)

    return pl.pallas_call(
        kernel,
        out_shape=jax.ShapeDtypeStruct((N, B * U), jnp.float32),
        grid=(n_tiles,),
        in_specs=[
            pl.BlockSpec((N, N), lambda i: (0, 0)),                  # adj (grid-invariant)
            pl.BlockSpec((N, batch_tile * D), lambda i: (0, i)),     # x, batch-tiled lanes
            pl.BlockSpec((N, batch_tile * U), lambda i: (0, i)),     # h, batch-tiled lanes
            pl.BlockSpec((D, 2 * U), lambda i: (0, 0)),              # w0x
            pl.BlockSpec((U, 2 * U), lambda i: (0, 0)),              # w0h
            pl.BlockSpec((D, U), lambda i: (0, 0)),                  # w1x
            pl.BlockSpec((U, U), lambda i: (0, 0)),                  # w1h
            pl.BlockSpec((1, 2 * U), lambda i: (0, 0)),              # b0
            pl.BlockSpec((1, U), lambda i: (0, 0)),                  # b1
        ],
        out_specs=pl.BlockSpec((N, batch_tile * U), lambda i: (0, i)),
        # state slab (input index 2) is updated in place -> reuse its HBM buffer
        input_output_aliases={2: 0},
        compiler_params=pltpu.CompilerParams(
            dimension_semantics=("parallel",),
            vmem_limit_bytes=32 * 1024 * 1024),
        cost_estimate=pl.CostEstimate(flops=flops,
                                      transcendentals=transcendentals,
                                      bytes_accessed=bytes_accessed),
    )(params["adj"], x_nf, h_nf, params["w0x"], params["w0h"],
      params["w1x"], params["w1h"], params["b0"], params["b1"])


def tgcn_cell_forward(inputs, state, adj_norm, w0, b0, w1, b1, *,
                      num_nodes, num_units, input_dim,
                      matmul_dtype=jnp.bfloat16):
    """Drop-in equivalent of TGCNCell.forward: (B, N*D), (B, N*U) -> (B, N*U).

    For RNN use, prefer prepare_tgcn_params() + tgcn_cell_step() directly so the weight
    prep and the fold/unfold layout plumbing stay outside the timestep loop.
    """
    assert input_dim == num_units, (
        "TGCNCell's weight-dict keying requires input_dim == num_units")
    params = prepare_tgcn_params(adj_norm, w0, b0, w1, b1,
                                 num_units=num_units, input_dim=input_dim,
                                 matmul_dtype=matmul_dtype)
    x_nf = fold_to_node_major(inputs, num_nodes, input_dim).astype(matmul_dtype)
    h_nf = fold_to_node_major(state, num_nodes, num_units).astype(jnp.float32)
    new_nf = tgcn_cell_step(params, x_nf, h_nf, num_nodes=num_nodes,
                            num_units=num_units, input_dim=input_dim)
    return unfold_from_node_major(new_nf, num_nodes, num_units)


def tgcn_cell_reference(inputs, state, adj_norm, w0, b0, w1, b1, *,
                        num_nodes, num_units, input_dim,
                        matmul_dtype=jnp.float32):
    """Pure-JAX reference matching the PyTorch forward semantics.

    matmul_dtype quantizes adj / inputs / weights like the kernel does (state and all
    elementwise math stay f32), so the comparison isolates structural correctness.
    """
    q = lambda a: a.astype(matmul_dtype).astype(jnp.float32)
    batch = inputs.shape[0]
    adj = q(adj_norm)
    x = q(inputs).reshape(batch, num_nodes, input_dim)
    h = state.astype(jnp.float32).reshape(batch, num_nodes, num_units)
    w0q, w1q = q(w0), q(w1)

    def gc(feat_a, feat_b, w, bias):
        xs = jnp.concatenate([feat_a, feat_b], axis=-1)          # (B, N, I)
        ax = jnp.einsum("nm,bmi->bni", adj, xs)                  # graph conv
        return jnp.einsum("bni,io->bno", ax, w) + bias

    gates = jax.nn.sigmoid(gc(x, h, w0q, b0))
    r, u = gates[..., :num_units], gates[..., num_units:]
    c = jnp.tanh(gc(x, r * h, w1q, b1))
    new_state = u * h + (1.0 - u) * c
    return new_state.reshape(batch, num_nodes * num_units)


if __name__ == "__main__":
    # Small, module-consistent shapes.
    batch = 2
    num_nodes = 16
    num_units = 8
    input_dim = num_units        # required by the reference module's weight-dict keying
    input_size = input_dim + num_units          # == 2 * num_units
    matmul_dtype = jnp.bfloat16

    key = jax.random.PRNGKey(0)
    k_adj, k_w0, k_w1, k_x, k_h, k_seq = jax.random.split(key, 6)

    # Deterministic symmetric binary adjacency (no self loops).
    a = jax.random.bernoulli(k_adj, 0.3, (num_nodes, num_nodes)).astype(jnp.float32)
    adj = jnp.triu(a, 1)
    adj = adj + adj.T
    adj_norm = calculate_normalized_laplacian(adj).astype(jnp.float32)

    # Parameters per TGCNCell.init_params (xavier_normal_ weights, zero biases).
    std0 = float(np.sqrt(2.0 / (input_size + 2 * num_units)))
    std1 = float(np.sqrt(2.0 / (input_size + num_units)))
    w0 = jax.random.normal(k_w0, (input_size, 2 * num_units), jnp.float32) * std0
    w1 = jax.random.normal(k_w1, (input_size, num_units), jnp.float32) * std1
    b0 = jnp.zeros((2 * num_units,), jnp.float32)   # bias_start = 0.0
    b1 = jnp.zeros((num_units,), jnp.float32)

    # Forward inputs.
    inputs = jax.random.normal(k_x, (batch, num_nodes * input_dim), jnp.float32)
    state = jax.random.normal(k_h, (batch, num_nodes * num_units), jnp.float32)

    # ---- single-step forward, module-compatible layout ----
    fwd = jax.jit(tgcn_cell_forward,
                  static_argnames=("num_nodes", "num_units", "input_dim"))
    out = fwd(inputs, state, adj_norm, w0, b0, w1, b1,
              num_nodes=num_nodes, num_units=num_units, input_dim=input_dim)
    out = jax.block_until_ready(out)

    ref = tgcn_cell_reference(inputs, state, adj_norm, w0, b0, w1, b1,
                              num_nodes=num_nodes, num_units=num_units,
                              input_dim=input_dim, matmul_dtype=matmul_dtype)
    ref = jax.block_until_ready(ref)

    assert out.shape == (batch, num_nodes * num_units)
    np.testing.assert_allclose(np.asarray(out), np.asarray(ref), rtol=2e-2, atol=2e-2)

    # ---- multi-step recurrence: hoisted params + persistent folded state (scan) ----
    seq_len = 3
    inputs_seq = jax.random.normal(
        k_seq, (seq_len, batch, num_nodes * input_dim), jnp.float32)

    params = prepare_tgcn_params(adj_norm, w0, b0, w1, b1,
                                 num_units=num_units, input_dim=input_dim,
                                 matmul_dtype=matmul_dtype)
    x_seq_nf = (inputs_seq.reshape(seq_len, batch, num_nodes, input_dim)
                .transpose(0, 2, 1, 3)
                .reshape(seq_len, num_nodes, batch * input_dim)
                .astype(matmul_dtype))
    h0_nf = fold_to_node_major(state, num_nodes, num_units).astype(jnp.float32)

    @jax.jit
    def run_seq(params, x_seq_nf, h0_nf):
        def step(h_nf, x_nf):
            h_new = tgcn_cell_step(params, x_nf, h_nf, num_nodes=num_nodes,
                                   num_units=num_units, input_dim=input_dim)
            return h_new, None
        h_final, _ = jax.lax.scan(step, h0_nf, x_seq_nf)
        return h_final

    h_final_nf = jax.block_until_ready(run_seq(params, x_seq_nf, h0_nf))
    h_final = unfold_from_node_major(h_final_nf, num_nodes, num_units)

    ref_state = state
    for t in range(seq_len):
        ref_state = tgcn_cell_reference(
            inputs_seq[t], ref_state, adj_norm, w0, b0, w1, b1,
            num_nodes=num_nodes, num_units=num_units, input_dim=input_dim,
            matmul_dtype=matmul_dtype)
    np.testing.assert_allclose(np.asarray(h_final), np.asarray(ref_state),
                               rtol=3e-2, atol=3e-2)

    print("KERNEL_OK")
</pallas_src>

<mosaic_0001>
module attributes {stable_mosaic.version = 11 : i64} {
  func.func @kernel(%arg0: i32, %arg1: memref<16x16xbf16, #tpu.memory_space<vmem>>, %arg2: memref<16x16xbf16, #tpu.memory_space<vmem>>, %arg3: memref<16x16xf32, #tpu.memory_space<vmem>>, %arg4: memref<8x16xbf16, #tpu.memory_space<vmem>>, %arg5: memref<8x16xbf16, #tpu.memory_space<vmem>>, %arg6: memref<8x8xbf16, #tpu.memory_space<vmem>>, %arg7: memref<8x8xbf16, #tpu.memory_space<vmem>>, %arg8: memref<1x16xf32, #tpu.memory_space<vmem>>, %arg9: memref<1x8xf32, #tpu.memory_space<vmem>>, %arg10: memref<16x16xf32, #tpu.memory_space<vmem>>) attributes {dimension_semantics = [#tpu.dimension_semantics<parallel>], iteration_bounds = array<i64: 1>, scalar_prefetch = 0 : i64, scratch_operands = 0 : i64, tpu.core_type = #tpu.core_type<tc>, window_params = [{pipeline_mode = #tpu.pipeline_mode<synchronous>, transform_indices = @transform_0, window_bounds = array<i64: 16, 16>}, {transform_indices = @transform_1, window_bounds = array<i64: 16, 16>}, {transform_indices = @transform_2, window_bounds = array<i64: 16, 16>}, {pipeline_mode = #tpu.pipeline_mode<synchronous>, transform_indices = @transform_3, window_bounds = array<i64: 8, 16>}, {pipeline_mode = #tpu.pipeline_mode<synchronous>, transform_indices = @transform_4, window_bounds = array<i64: 8, 16>}, {pipeline_mode = #tpu.pipeline_mode<synchronous>, transform_indices = @transform_5, window_bounds = array<i64: 8, 8>}, {pipeline_mode = #tpu.pipeline_mode<synchronous>, transform_indices = @transform_6, window_bounds = array<i64: 8, 8>}, {pipeline_mode = #tpu.pipeline_mode<synchronous>, transform_indices = @transform_7, window_bounds = array<i64: 1, 16>}, {pipeline_mode = #tpu.pipeline_mode<synchronous>, transform_indices = @transform_8, window_bounds = array<i64: 1, 8>}, {transform_indices = @transform_9, window_bounds = array<i64: 16, 16>}]} {
    %c0 = arith.constant 0 : index
    %c0_0 = arith.constant 0 : index
    %0 = vector.load %arg1[%c0, %c0_0] : memref<16x16xbf16, #tpu.memory_space<vmem>>, vector<16x16xbf16>
    %c0_1 = arith.constant 0 : index
    %c0_2 = arith.constant 0 : index
    %1 = vector.load %arg2[%c0_1, %c0_2] : memref<16x16xbf16, #tpu.memory_space<vmem>>, vector<16x16xbf16>
    %c0_3 = arith.constant 0 : index
    %c0_4 = arith.constant 0 : index
    %2 = vector.load %arg3[%c0_3, %c0_4] : memref<16x16xf32, #tpu.memory_space<vmem>>, vector<16x16xf32>
    %cst = arith.constant dense<0.000000e+00> : vector<16x16xf32>
    %3 = tpu.matmul %0, %1, %cst {dimension_numbers = #tpu.dot_dimension_numbers<[1], [0], [0], [1], [0, 0, 1, 1], [], []>} : vector<16x16xbf16>, vector<16x16xbf16>, vector<16x16xf32> -> vector<16x16xf32>
    %4 = arith.truncf %2 : vector<16x16xf32> to vector<16x16xbf16>
    %cst_5 = arith.constant dense<0.000000e+00> : vector<16x16xf32>
    %5 = tpu.matmul %0, %4, %cst_5 {dimension_numbers = #tpu.dot_dimension_numbers<[1], [0], [0], [1], [0, 0, 1, 1], [], []>} : vector<16x16xbf16>, vector<16x16xbf16>, vector<16x16xf32> -> vector<16x16xf32>
    %6 = arith.truncf %3 : vector<16x16xf32> to vector<16x16xbf16>
    %7 = arith.truncf %5 : vector<16x16xf32> to vector<16x16xbf16>
    %c0_6 = arith.constant 0 : index
    %c0_7 = arith.constant 0 : index
    %8 = vector.load %arg4[%c0_6, %c0_7] : memref<8x16xbf16, #tpu.memory_space<vmem>>, vector<8x16xbf16>
    %c0_8 = arith.constant 0 : index
    %c0_9 = arith.constant 0 : index
    %9 = vector.load %arg5[%c0_8, %c0_9] : memref<8x16xbf16, #tpu.memory_space<vmem>>, vector<8x16xbf16>
    %c0_10 = arith.constant 0 : index
    %c0_11 = arith.constant 0 : index
    %10 = vector.load %arg6[%c0_10, %c0_11] : memref<8x8xbf16, #tpu.memory_space<vmem>>, vector<8x8xbf16>
    %c0_12 = arith.constant 0 : index
    %c0_13 = arith.constant 0 : index
    %11 = vector.load %arg7[%c0_12, %c0_13] : memref<8x8xbf16, #tpu.memory_space<vmem>>, vector<8x8xbf16>
    %c0_14 = arith.constant 0 : index
    %c0_15 = arith.constant 0 : index
    %12 = vector.load %arg8[%c0_14, %c0_15] : memref<1x16xf32, #tpu.memory_space<vmem>>, vector<1x16xf32>
    %c0_16 = arith.constant 0 : index
    %c0_17 = arith.constant 0 : index
    %13 = vector.load %arg9[%c0_16, %c0_17] : memref<1x8xf32, #tpu.memory_space<vmem>>, vector<1x8xf32>
    %14 = vector.extract_strided_slice %6 {offsets = [0, 0], sizes = [16, 8], strides = [1, 1]} : vector<16x16xbf16> to vector<16x8xbf16>
    %15 = vector.extract_strided_slice %7 {offsets = [0, 0], sizes = [16, 8], strides = [1, 1]} : vector<16x16xbf16> to vector<16x8xbf16>
    %16 = vector.extract_strided_slice %2 {offsets = [0, 0], sizes = [16, 8], strides = [1, 1]} : vector<16x16xf32> to vector<16x8xf32>
    %cst_18 = arith.constant dense<0.000000e+00> : vector<16x16xf32>
    %17 = tpu.matmul %14, %8, %cst_18 {dimension_numbers = #tpu.dot_dimension_numbers<[1], [0], [0], [1], [0, 0, 1, 1], [], []>} : vector<16x8xbf16>, vector<8x16xbf16>, vector<16x16xf32> -> vector<16x16xf32>
    %cst_19 = arith.constant dense<0.000000e+00> : vector<16x16xf32>
    %18 = tpu.matmul %15, %9, %cst_19 {dimension_numbers = #tpu.dot_dimension_numbers<[1], [0], [0], [1], [0, 0, 1, 1], [], []>} : vector<16x8xbf16>, vector<8x16xbf16>, vector<16x16xf32> -> vector<16x16xf32>
    %19 = arith.addf %17, %18 : vector<16x16xf32>
    %20 = vector.broadcast %12 : vector<1x16xf32> to vector<16x16xf32>
    %21 = arith.addf %19, %20 : vector<16x16xf32>
    %22 = arith.negf %21 : vector<16x16xf32>
    %23 = math.exp %22 : vector<16x16xf32>
    %cst_20 = arith.constant 1.000000e+00 : f32
    %24 = vector.broadcast %cst_20 : f32 to vector<16x16xf32>
    %25 = arith.addf %24, %23 : vector<16x16xf32>
    %26 = arith.divf %24, %25 : vector<16x16xf32>
    %27 = vector.extract_strided_slice %26 {offsets = [0, 0], sizes = [16, 8], strides = [1, 1]} : vector<16x16xf32> to vector<16x8xf32>
    %28 = vector.extract_strided_slice %26 {offsets = [0, 8], sizes = [16, 8], strides = [1, 1]} : vector<16x16xf32> to vector<16x8xf32>
    %29 = arith.mulf %27, %16 : vector<16x8xf32>
    %30 = vector.extract_strided_slice %6 {offsets = [0, 8], sizes = [16, 8], strides = [1, 1]} : vector<16x16xbf16> to vector<16x8xbf16>
    %31 = vector.extract_strided_slice %7 {offsets = [0, 8], sizes = [16, 8], strides = [1, 1]} : vector<16x16xbf16> to vector<16x8xbf16>
    %32 = vector.extract_strided_slice %2 {offsets = [0, 8], sizes = [16, 8], strides = [1, 1]} : vector<16x16xf32> to vector<16x8xf32>
    %cst_21 = arith.constant dense<0.000000e+00> : vector<16x16xf32>
    %33 = tpu.matmul %30, %8, %cst_21 {dimension_numbers = #tpu.dot_dimension_numbers<[1], [0], [0], [1], [0, 0, 1, 1], [], []>} : vector<16x8xbf16>, vector<8x16xbf16>, vector<16x16xf32> -> vector<16x16xf32>
    %cst_22 = arith.constant dense<0.000000e+00> : vector<16x16xf32>
    %34 = tpu.matmul %31, %9, %cst_22 {dimension_numbers = #tpu.dot_dimension_numbers<[1], [0], [0], [1], [0, 0, 1, 1], [], []>} : vector<16x8xbf16>, vector<8x16xbf16>, vector<16x16xf32> -> vector<16x16xf32>
    %35 = arith.addf %33, %34 : vector<16x16xf32>
    %36 = vector.broadcast %12 : vector<1x16xf32> to vector<16x16xf32>
    %37 = arith.addf %35, %36 : vector<16x16xf32>
    %38 = arith.negf %37 : vector<16x16xf32>
    %39 = math.exp %38 : vector<16x16xf32>
    %cst_23 = arith.constant 1.000000e+00 : f32
    %40 = vector.broadcast %cst_23 : f32 to vector<16x16xf32>
    %41 = arith.addf %40, %39 : vector<16x16xf32>
    %42 = arith.divf %40, %41 : vector<16x16xf32>
    %43 = vector.extract_strided_slice %42 {offsets = [0, 0], sizes = [16, 8], strides = [1, 1]} : vector<16x16xf32> to vector<16x8xf32>
    %44 = vector.extract_strided_slice %42 {offsets = [0, 8], sizes = [16, 8], strides = [1, 1]} : vector<16x16xf32> to vector<16x8xf32>
    %45 = arith.mulf %43, %32 : vector<16x8xf32>
    %46 = tpu.concatenate %29, %45 in 1 : vector<16x8xf32>, vector<16x8xf32> -> vector<16x16xf32>
    %47 = arith.truncf %46 : vector<16x16xf32> to vector<16x16xbf16>
    %cst_24 = arith.constant dense<0.000000e+00> : vector<16x16xf32>
    %48 = tpu.matmul %0, %47, %cst_24 {dimension_numbers = #tpu.dot_dimension_numbers<[1], [0], [0], [1], [0, 0, 1, 1], [], []>} : vector<16x16xbf16>, vector<16x16xbf16>, vector<16x16xf32> -> vector<16x16xf32>
    %49 = arith.truncf %48 : vector<16x16xf32> to vector<16x16xbf16>
    %50 = vector.extract_strided_slice %6 {offsets = [0, 0], sizes = [16, 8], strides = [1, 1]} : vector<16x16xbf16> to vector<16x8xbf16>
    %cst_25 = arith.constant dense<0.000000e+00> : vector<16x8xf32>
    %51 = tpu.matmul %50, %10, %cst_25 {dimension_numbers = #tpu.dot_dimension_numbers<[1], [0], [0], [1], [0, 0, 1, 1], [], []>} : vector<16x8xbf16>, vector<8x8xbf16>, vector<16x8xf32> -> vector<16x8xf32>
    %52 = vector.extract_strided_slice %49 {offsets = [0, 0], sizes = [16, 8], strides = [1, 1]} : vector<16x16xbf16> to vector<16x8xbf16>
    %cst_26 = arith.constant dense<0.000000e+00> : vector<16x8xf32>
    %53 = tpu.matmul %52, %11, %cst_26 {dimension_numbers = #tpu.dot_dimension_numbers<[1], [0], [0], [1], [0, 0, 1, 1], [], []>} : vector<16x8xbf16>, vector<8x8xbf16>, vector<16x8xf32> -> vector<16x8xf32>
    %54 = arith.addf %51, %53 : vector<16x8xf32>
    %55 = vector.broadcast %13 : vector<1x8xf32> to vector<16x8xf32>
    %56 = arith.addf %54, %55 : vector<16x8xf32>
    %57 = math.tanh %56 : vector<16x8xf32>
    %58 = arith.mulf %28, %16 : vector<16x8xf32>
    %cst_27 = arith.constant 1.000000e+00 : f32
    %59 = vector.broadcast %cst_27 : f32 to vector<16x8xf32>
    %60 = arith.subf %59, %28 : vector<16x8xf32>
    %61 = arith.mulf %60, %57 : vector<16x8xf32>
    %62 = arith.addf %58, %61 : vector<16x8xf32>
    %63 = vector.extract_strided_slice %6 {offsets = [0, 8], sizes = [16, 8], strides = [1, 1]} : vector<16x16xbf16> to vector<16x8xbf16>
    %cst_28 = arith.constant dense<0.000000e+00> : vector<16x8xf32>
    %64 = tpu.matmul %63, %10, %cst_28 {dimension_numbers = #tpu.dot_dimension_numbers<[1], [0], [0], [1], [0, 0, 1, 1], [], []>} : vector<16x8xbf16>, vector<8x8xbf16>, vector<16x8xf32> -> vector<16x8xf32>
    %65 = vector.extract_strided_slice %49 {offsets = [0, 8], sizes = [16, 8], strides = [1, 1]} : vector<16x16xbf16> to vector<16x8xbf16>
    %cst_29 = arith.constant dense<0.000000e+00> : vector<16x8xf32>
    %66 = tpu.matmul %65, %11, %cst_29 {dimension_numbers = #tpu.dot_dimension_numbers<[1], [0], [0], [1], [0, 0, 1, 1], [], []>} : vector<16x8xbf16>, vector<8x8xbf16>, vector<16x8xf32> -> vector<16x8xf32>
    %67 = arith.addf %64, %66 : vector<16x8xf32>
    %68 = vector.broadcast %13 : vector<1x8xf32> to vector<16x8xf32>
    %69 = arith.addf %67, %68 : vector<16x8xf32>
    %70 = math.tanh %69 : vector<16x8xf32>
    %71 = arith.mulf %44, %32 : vector<16x8xf32>
    %cst_30 = arith.constant 1.000000e+00 : f32
    %72 = vector.broadcast %cst_30 : f32 to vector<16x8xf32>
    %73 = arith.subf %72, %44 : vector<16x8xf32>
    %74 = arith.mulf %73, %70 : vector<16x8xf32>
    %75 = arith.addf %71, %74 : vector<16x8xf32>
    %76 = tpu.concatenate %62, %75 in 1 : vector<16x8xf32>, vector<16x8xf32> -> vector<16x16xf32>
    %c0_31 = arith.constant 0 : index
    %c0_32 = arith.constant 0 : index
    %77 = vector.load %arg10[%c0_31, %c0_32] : memref<16x16xf32, #tpu.memory_space<vmem>>, vector<16x16xf32>
    tpu.vector_store %arg10[%c0_31, %c0_32], %76 {strides = array<i32>} : memref<16x16xf32, #tpu.memory_space<vmem>>, vector<16x16xf32>,
    return
  }
  func.func @transform_0(%arg0: i32) -> (i32, i32) {
    %c0_i32 = arith.constant 0 : i32
    %c0_i32_0 = arith.constant 0 : i32
    %c0_i32_1 = arith.constant 0 : i32
    return %c0_i32, %c0_i32_0 : i32, i32
  }
  func.func @transform_1(%arg0: i32) -> (i32, i32) {
    %c0_i32 = arith.constant 0 : i32
    %c0_i32_0 = arith.constant 0 : i32
    return %c0_i32, %arg0 : i32, i32
  }
  func.func @transform_2(%arg0: i32) -> (i32, i32) {
    %c0_i32 = arith.constant 0 : i32
    %c0_i32_0 = arith.constant 0 : i32
    return %c0_i32, %arg0 : i32, i32
  }
  func.func @transform_3(%arg0: i32) -> (i32, i32) {
    %c0_i32 = arith.constant 0 : i32
    %c0_i32_0 = arith.constant 0 : i32
    %c0_i32_1 = arith.constant 0 : i32
    return %c0_i32, %c0_i32_0 : i32, i32
  }
  func.func @transform_4(%arg0: i32) -> (i32, i32) {
    %c0_i32 = arith.constant 0 : i32
    %c0_i32_0 = arith.constant 0 : i32
    %c0_i32_1 = arith.constant 0 : i32
    return %c0_i32, %c0_i32_0 : i32, i32
  }
  func.func @transform_5(%arg0: i32) -> (i32, i32) {
    %c0_i32 = arith.constant 0 : i32
    %c0_i32_0 = arith.constant 0 : i32
    %c0_i32_1 = arith.constant 0 : i32
    return %c0_i32, %c0_i32_0 : i32, i32
  }
  func.func @transform_6(%arg0: i32) -> (i32, i32) {
    %c0_i32 = arith.constant 0 : i32
    %c0_i32_0 = arith.constant 0 : i32
    %c0_i32_1 = arith.constant 0 : i32
    return %c0_i32, %c0_i32_0 : i32, i32
  }
  func.func @transform_7(%arg0: i32) -> (i32, i32) {
    %c0_i32 = arith.constant 0 : i32
    %c0_i32_0 = arith.constant 0 : i32
    %c0_i32_1 = arith.constant 0 : i32
    return %c0_i32, %c0_i32_0 : i32, i32
  }
  func.func @transform_8(%arg0: i32) -> (i32, i32) {
    %c0_i32 = arith.constant 0 : i32
    %c0_i32_0 = arith.constant 0 : i32
    %c0_i32_1 = arith.constant 0 : i32
    return %c0_i32, %c0_i32_0 : i32, i32
  }
  func.func @transform_9(%arg0: i32) -> (i32, i32) {
    %c0_i32 = arith.constant 0 : i32
    %c0_i32_0 = arith.constant 0 : i32
    return %c0_i32, %arg0 : i32, i32
  }
}

</mosaic_0001>

<llo_original>
// kernel: tgcn_cell_forward.1
$region0: #{tgcn_cell_forward.1}
  #allocation0 [shape = 'u32[]', space=smem, size = 0x4, offset = 0x4, fixed_abs, tag = 'smem constant byte address 0x4 - core index']
  #allocation1 [shape = 'u32[144,128]{1,0:T(1,128)}', space=vmem, size = 0x12000, scoped, tag = 'internal scratch']
  %s0 = inlined_call_operand.vmem [shape: bf16[16,16], index: 0, kind: input, shape index: {}]
  %s1 = inlined_call_operand.vmem [shape: bf16[16,16], index: 1, kind: input, shape index: {}]
  %s2 = inlined_call_operand.vmem [shape: f32[16,16], index: 2, kind: input, shape index: {}, may-alias: {2,9}]
  %s3 = inlined_call_operand.vmem [shape: bf16[8,16], index: 3, kind: input, shape index: {}]
  %s4 = inlined_call_operand.vmem [shape: bf16[8,16], index: 4, kind: input, shape index: {}]
  %s5 = inlined_call_operand.vmem [shape: bf16[8,8], index: 5, kind: input, shape index: {}]
  %s6 = inlined_call_operand.vmem [shape: bf16[8,8], index: 6, kind: input, shape index: {}]
  %s7 = inlined_call_operand.vmem [shape: f32[1,16], index: 7, kind: input, shape index: {}]
  %s8 = inlined_call_operand.vmem [shape: f32[1,8], index: 8, kind: input, shape index: {}]
  %s9 = inlined_call_operand.vmem [shape: f32[16,16], index: 9, kind: output, shape index: {}, may-alias: {2,9}]
  %s10 = sld [smem:[#allocation0]]
  $region46: #{tgcn_cell_forward.1} parent=0
    _
  %s12 = ssub.s32 1, %s10
  %s13 = scalar_select 0, %s12, %s10
  // Predicated region
  $region2: #{tgcn_cell_forward.1} parent=0 // pred_check
    _
  $region3: #{tgcn_cell_forward.1} parent=0 // pred_check_branch
    %15 = sbr.rel (0) target = $region5
  $region4: #{tgcn_cell_forward.1} parent=0 // pred_region
    _
  $region5: #{tgcn_cell_forward.1} parent=0 // pred_fallthru
    _
  // Predicated region
  $region6: #{tgcn_cell_forward.1} parent=0 // pred_check
    _
  $region7: #{tgcn_cell_forward.1} parent=0 // pred_check_branch
    %17 = sbr.rel (0) target = $region9
  $region8: #{tgcn_cell_forward.1} parent=0 // pred_region
    _
  $region9: #{tgcn_cell_forward.1} parent=0 // pred_fallthru
    _
  // Predicated region
  $region10: #{tgcn_cell_forward.1} parent=0 // pred_check
    _
  $region11: #{tgcn_cell_forward.1} parent=0 // pred_check_branch
    %19 = sbr.rel (0) target = $region13
  $region12: #{tgcn_cell_forward.1} parent=0 // pred_region
    _
  $region13: #{tgcn_cell_forward.1} parent=0 // pred_fallthru
    _
  // Predicated region
  $region14: #{tgcn_cell_forward.1} parent=0 // pred_check
    _
  $region15: #{tgcn_cell_forward.1} parent=0 // pred_check_branch
    %21 = sbr.rel (0) target = $region17
  $region16: #{tgcn_cell_forward.1} parent=0 // pred_region
    _
  $region17: #{tgcn_cell_forward.1} parent=0 // pred_fallthru
    _
  // Predicated region
  $region18: #{tgcn_cell_forward.1} parent=0 // pred_check
    _
  $region19: #{tgcn_cell_forward.1} parent=0 // pred_check_branch
    %23 = sbr.rel (0) target = $region21
  $region20: #{tgcn_cell_forward.1} parent=0 // pred_region
    _
  $region21: #{tgcn_cell_forward.1} parent=0 // pred_fallthru
    _
  // Predicated region
  $region22: #{tgcn_cell_forward.1} parent=0 // pred_check
    _
  $region23: #{tgcn_cell_forward.1} parent=0 // pred_check_branch
    %25 = sbr.rel (0) target = $region25
  $region24: #{tgcn_cell_forward.1} parent=0 // pred_region
    _
  $region25: #{tgcn_cell_forward.1} parent=0 // pred_fallthru
    _
  // Predicated region
  $region26: #{tgcn_cell_forward.1} parent=0 // pred_check
    _
  $region27: #{tgcn_cell_forward.1} parent=0 // pred_check_branch
    %27 = sbr.rel (0) target = $region29
  $region28: #{tgcn_cell_forward.1} parent=0 // pred_region
    _
  $region29: #{tgcn_cell_forward.1} parent=0 // pred_fallthru
    _
  // Predicated region
  $region30: #{tgcn_cell_forward.1} parent=0 // pred_check
    _
  $region31: #{tgcn_cell_forward.1} parent=0 // pred_check_branch
    %29 = sbr.rel (0) target = $region33
  $region32: #{tgcn_cell_forward.1} parent=0 // pred_region
    _
  $region33: #{tgcn_cell_forward.1} parent=0 // pred_fallthru
    _
  // Predicated region
  $region34: #{tgcn_cell_forward.1} parent=0 // pred_check
    _
  $region35: #{tgcn_cell_forward.1} parent=0 // pred_check_branch
    %31 = sbr.rel (0) target = $region37
  $region36: #{tgcn_cell_forward.1} parent=0 // pred_region
    _
  $region37: #{tgcn_cell_forward.1} parent=0 // pred_fallthru
    _
  %v33 = vld [vmem:[%s0] sm:$0xf]
  %v34 = vld [vmem:[%s0 + $0x4] sm:$0xf]
  %v35 = vld [vmem:[%s1] sm:$0xf]
  %v36 = vld [vmem:[%s1 + $0x4] sm:$0xf]
  %v37 = vld [vmem:[%s2] sm:$0xff]
  %v38 = vld [vmem:[%s2 + $0x8] sm:$0xff]
  %v41 = vunpack.c.l.b16 %v33
  %v42 = vunpack.c.l.b16 %v34
  %v43 = vpack.c.b16 %v42, %v41
  %v46 = vunpack.c.l.b16 %v35
  %v47 = vunpack.c.l.b16 %v36
  %v48 = vpack.c.b16 %v47, %v46
  %vm50 = vcmask 130048
  %v52 = vsel %vm50, %v43, 0
  %54 = vmatprep.subr.bf16.mxu0 0
  %55 = vmatpush1.bf16.msra.mxu0 %v48
  %56 = vmatprep.subr.bf16.mxu0 0
  %57 = vmatpush1.bf16.msra.mxu0 0
  %58 = vmatprep.subr.bf16.mxu0 0
  %59 = vmatpush1.bf16.msra.mxu0 0
  %60 = vmatprep.subr.bf16.mxu0 0
  %61 = vmatpush1.bf16.msra.mxu0 0
  %62 = vmatprep.subr.bf16.mxu0 0
  %63 = vmatpush1.bf16.msra.mxu0 0
  %64 = vmatprep.subr.bf16.mxu0 0
  %65 = vmatpush1.bf16.msra.mxu0 0
  %66 = vmatprep.subr.bf16.mxu0 0
  %67 = vmatpush1.bf16.msra.mxu0 0
  %68 = vmatprep.subr.bf16.mxu0 0
  %69 = vmatpush1.bf16.msra.mxu0 0
  %70 = vmatprep.subr.bf16.mxu0 0
  %71 = vmatpush1.bf16.msra.mxu0 0
  %72 = vmatprep.subr.bf16.mxu0 0
  %73 = vmatpush1.bf16.msra.mxu0 0
  %74 = vmatprep.subr.bf16.mxu0 0
  %75 = vmatpush1.bf16.msra.mxu0 0
  %76 = vmatprep.subr.bf16.mxu0 0
  %77 = vmatpush1.bf16.msra.mxu0 0
  %78 = vmatprep.subr.bf16.mxu0 0
  %79 = vmatpush1.bf16.msra.mxu0 0
  %80 = vmatprep.subr.bf16.mxu0 0
  %81 = vmatpush1.bf16.msra.mxu0 0
  %82 = vmatprep.subr.bf16.mxu0 0
  %83 = vmatpush1.bf16.msra.mxu0 0
  %84 = vmatprep.subr.bf16.mxu0 0
  %85 = vmatpush1.bf16.msra.mxu0 0
  %86 = vmatprep.mubr.bf16.mxu0 0
  %87 = vmatmul.mubr.bf16.gmra.mrb[0].mxu0 %v52
  %v88 = vpop.f32.mrb[0].mxu0
  %v89 = vadd.f32 0.0, %v88
  %v90 = vpop.f32.mrb[0].mxu0
  %v91 = vpop.f32.mrb[0].mxu0
  %v92 = vadd.f32 0.0, %v91
  %v93 = vpop.f32.mrb[0].mxu0
  %94 = vdwg.mxu0
  %v95 = vpack.c.bf16 %v38, %v37
  %96 = vmatprep.subr.bf16.mxu0 0
  %97 = vmatpush1.bf16.msra.mxu0 %v95
  %98 = vmatprep.subr.bf16.mxu0 0
  %99 = vmatpush1.bf16.msra.mxu0 0
  %100 = vmatprep.subr.bf16.mxu0 0
  %101 = vmatpush1.bf16.msra.mxu0 0
  %102 = vmatprep.subr.bf16.mxu0 0
  %103 = vmatpush1.bf16.msra.mxu0 0
  %104 = vmatprep.subr.bf16.mxu0 0
  %105 = vmatpush1.bf16.msra.mxu0 0
  %106 = vmatprep.subr.bf16.mxu0 0
  %107 = vmatpush1.bf16.msra.mxu0 0
  %108 = vmatprep.subr.bf16.mxu0 0
  %109 = vmatpush1.bf16.msra.mxu0 0
  %110 = vmatprep.subr.bf16.mxu0 0
  %111 = vmatpush1.bf16.msra.mxu0 0
  %112 = vmatprep.subr.bf16.mxu0 0
  %113 = vmatpush1.bf16.msra.mxu0 0
  %114 = vmatprep.subr.bf16.mxu0 0
  %115 = vmatpush1.bf16.msra.mxu0 0
  %116 = vmatprep.subr.bf16.mxu0 0
  %117 = vmatpush1.bf16.msra.mxu0 0
  %118 = vmatprep.subr.bf16.mxu0 0
  %119 = vmatpush1.bf16.msra.mxu0 0
  %120 = vmatprep.subr.bf16.mxu0 0
  %121 = vmatpush1.bf16.msra.mxu0 0
  %122 = vmatprep.subr.bf16.mxu0 0
  %123 = vmatpush1.bf16.msra.mxu0 0
  %124 = vmatprep.subr.bf16.mxu0 0
  %125 = vmatpush1.bf16.msra.mxu0 0
  %126 = vmatprep.subr.bf16.mxu0 0
  %127 = vmatpush1.bf16.msra.mxu0 0
  %128 = vmatprep.mubr.bf16.mxu0 0
  %129 = vmatmul.mubr.bf16.gmra.mrb[0].mxu0 %v52
  %v130 = vpop.f32.mrb[0].mxu0
  %v131 = vadd.f32 0.0, %v130
  %v132 = vpop.f32.mrb[0].mxu0
  %v133 = vpop.f32.mrb[0].mxu0
  %v134 = vadd.f32 0.0, %v133
  %v135 = vpop.f32.mrb[0].mxu0
  %136 = vdwg.mxu0
  %v137 = vpack.c.bf16 %v92, %v89
  %v138 = vpack.c.bf16 %v134, %v131
  %v139 = vld [vmem:[%s3] sm:$0xf]
  %v140 = vld [vmem:[%s4] sm:$0xf]
  %v141 = vld [vmem:[%s5] sm:$0xf]
  %v142 = vld [vmem:[%s6] sm:$0xf]
  %v143 = vld [vmem:[%s7] sm:$0x1]
  %v144 = vld [vmem:[%s8] sm:$0x1]
  %vm145 = vcmask 64512
  %v147 = vsel %vm145, %v138, 0
  %vm149 = vcmask 1043456
  %v151 = vsel %vm149, %v140, 0
  %153 = vmatprep.subr.bf16.mxu0 0
  %154 = vmatpush1.bf16.msra.mxu0 %v151
  %155 = vmatprep.subr.bf16.mxu0 0
  %156 = vmatpush1.bf16.msra.mxu0 0
  %157 = vmatprep.subr.bf16.mxu0 0
  %158 = vmatpush1.bf16.msra.mxu0 0
  %159 = vmatprep.subr.bf16.mxu0 0
  %160 = vmatpush1.bf16.msra.mxu0 0
  %161 = vmatprep.subr.bf16.mxu0 0
  %162 = vmatpush1.bf16.msra.mxu0 0
  %163 = vmatprep.subr.bf16.mxu0 0
  %164 = vmatpush1.bf16.msra.mxu0 0
  %165 = vmatprep.subr.bf16.mxu0 0
  %166 = vmatpush1.bf16.msra.mxu0 0
  %167 = vmatprep.subr.bf16.mxu0 0
  %168 = vmatpush1.bf16.msra.mxu0 0
  %169 = vmatprep.subr.bf16.mxu0 0
  %170 = vmatpush1.bf16.msra.mxu0 0
  %171 = vmatprep.subr.bf16.mxu0 0
  %172 = vmatpush1.bf16.msra.mxu0 0
  %173 = vmatprep.subr.bf16.mxu0 0
  %174 = vmatpush1.bf16.msra.mxu0 0
  %175 = vmatprep.subr.bf16.mxu0 0
  %176 = vmatpush1.bf16.msra.mxu0 0
  %177 = vmatprep.subr.bf16.mxu0 0
  %178 = vmatpush1.bf16.msra.mxu0 0
  %179 = vmatprep.subr.bf16.mxu0 0
  %180 = vmatpush1.bf16.msra.mxu0 0
  %181 = vmatprep.subr.bf16.mxu0 0
  %182 = vmatpush1.bf16.msra.mxu0 0
  %183 = vmatprep.subr.bf16.mxu0 0
  %184 = vmatpush1.bf16.msra.mxu0 0
  %185 = vmatprep.mubr.bf16.mxu0 0
  %186 = vmatmul.mubr.bf16.gmra.mrb[0].mxu0 %v147
  %v187 = vpop.f32.mrb[0].mxu0
  %v188 = vadd.f32 0.0, %v187
  %v189 = vpop.f32.mrb[0].mxu0
  %v190 = vpop.f32.mrb[0].mxu0
  %v191 = vadd.f32 0.0, %v190
  %v192 = vpop.f32.mrb[0].mxu0
  %193 = vdwg.mxu0
  %v195 = vsel %vm145, %v137, 0
  %v198 = vsel %vm149, %v139, 0
  %200 = vmatprep.subr.bf16.mxu0 0
  %201 = vmatpush1.bf16.msra.mxu0 %v198
  %202 = vmatprep.subr.bf16.mxu0 0
  %203 = vmatpush1.bf16.msra.mxu0 0
  %204 = vmatprep.subr.bf16.mxu0 0
  %205 = vmatpush1.bf16.msra.mxu0 0
  %206 = vmatprep.subr.bf16.mxu0 0
  %207 = vmatpush1.bf16.msra.mxu0 0
  %208 = vmatprep.subr.bf16.mxu0 0
  %209 = vmatpush1.bf16.msra.mxu0 0
  %210 = vmatprep.subr.bf16.mxu0 0
  %211 = vmatpush1.bf16.msra.mxu0 0
  %212 = vmatprep.subr.bf16.mxu0 0
  %213 = vmatpush1.bf16.msra.mxu0 0
  %214 = vmatprep.subr.bf16.mxu0 0
  %215 = vmatpush1.bf16.msra.mxu0 0
  %216 = vmatprep.subr.bf16.mxu0 0
  %217 = vmatpush1.bf16.msra.mxu0 0
  %218 = vmatprep.subr.bf16.mxu0 0
  %219 = vmatpush1.bf16.msra.mxu0 0
  %220 = vmatprep.subr.bf16.mxu0 0
  %221 = vmatpush1.bf16.msra.mxu0 0
  %222 = vmatprep.subr.bf16.mxu0 0
  %223 = vmatpush1.bf16.msra.mxu0 0
  %224 = vmatprep.subr.bf16.mxu0 0
  %225 = vmatpush1.bf16.msra.mxu0 0
  %226 = vmatprep.subr.bf16.mxu0 0
  %227 = vmatpush1.bf16.msra.mxu0 0
  %228 = vmatprep.subr.bf16.mxu0 0
  %229 = vmatpush1.bf16.msra.mxu0 0
  %230 = vmatprep.subr.bf16.mxu0 0
  %231 = vmatpush1.bf16.msra.mxu0 0
  %232 = vmatprep.mubr.bf16.mxu0 0
  %233 = vmatmul.mubr.bf16.gmra.mrb[0].mxu0 %v195
  %v234 = vpop.f32.mrb[0].mxu0
  %v235 = vadd.f32 %v188, %v234
  %v236 = vpop.f32.mrb[0].mxu0
  %v237 = vpop.f32.mrb[0].mxu0
  %v238 = vadd.f32 %v191, %v237
  %v239 = vpop.f32.mrb[0].mxu0
  %240 = vdwg.mxu0
  %v242 = vlaneseq
  %v243 = vshrl.u32 %v242, 7
  %v244 = vsub.s32 0, %v243
  %v245 = vrot.slane %v143, %v244
  %v247 = vadd.f32 %v235, %v245
  %v248 = vadd.f32 %v238, %v245
  %v249 = vxor.u32 %v247, 2147483648
  %v250 = vxor.u32 %v248, 2147483648
  %v251 = vmul.f32 %v249, 1.442695
  %v252 = vpow.pop %v251
  %v253 = vmul.f32 %v250, 1.442695
  %v254 = vpow.pop %v253
  %v255 = vadd.f32 %v252, 1.0
  %v256 = vadd.f32 %v254, 1.0
  %v257 = vrcp.pop %v255
  %v258 = vmul.f32 1.0, %v257
  %v259 = vrcp.pop %v256
  %v260 = vmul.f32 1.0, %v259
  %v261 = vmul.f32 %v258, %v37
  %v262 = vmul.f32 %v260, %v38
  %264 = vrot.lane.b32.xlu0 %v138, 120
  %v265 = vpop.permute.xlu0 %264
  %v267 = vsel %vm145, %v265, 0
  %269 = vmatprep.subr.bf16.mxu0 0
  %270 = vmatpush1.bf16.msra.mxu0 %v151
  %271 = vmatprep.subr.bf16.mxu0 0
  %272 = vmatpush1.bf16.msra.mxu0 0
  %273 = vmatprep.subr.bf16.mxu0 0
  %274 = vmatpush1.bf16.msra.mxu0 0
  %275 = vmatprep.subr.bf16.mxu0 0
  %276 = vmatpush1.bf16.msra.mxu0 0
  %277 = vmatprep.subr.bf16.mxu0 0
  %278 = vmatpush1.bf16.msra.mxu0 0
  %279 = vmatprep.subr.bf16.mxu0 0
  %280 = vmatpush1.bf16.msra.mxu0 0
  %281 = vmatprep.subr.bf16.mxu0 0
  %282 = vmatpush1.bf16.msra.mxu0 0
  %283 = vmatprep.subr.bf16.mxu0 0
  %284 = vmatpush1.bf16.msra.mxu0 0
  %285 = vmatprep.subr.bf16.mxu0 0
  %286 = vmatpush1.bf16.msra.mxu0 0
  %287 = vmatprep.subr.bf16.mxu0 0
  %288 = vmatpush1.bf16.msra.mxu0 0
  %289 = vmatprep.subr.bf16.mxu0 0
  %290 = vmatpush1.bf16.msra.mxu0 0
  %291 = vmatprep.subr.bf16.mxu0 0
  %292 = vmatpush1.bf16.msra.mxu0 0
  %293 = vmatprep.subr.bf16.mxu0 0
  %294 = vmatpush1.bf16.msra.mxu0 0
  %295 = vmatprep.subr.bf16.mxu0 0
  %296 = vmatpush1.bf16.msra.mxu0 0
  %297 = vmatprep.subr.bf16.mxu0 0
  %298 = vmatpush1.bf16.msra.mxu0 0
  %299 = vmatprep.subr.bf16.mxu0 0
  %300 = vmatpush1.bf16.msra.mxu0 0
  %301 = vmatprep.mubr.bf16.mxu0 0
  %302 = vmatmul.mubr.bf16.gmra.mrb[0].mxu0 %v267
  %v303 = vpop.f32.mrb[0].mxu0
  %v304 = vadd.f32 0.0, %v303
  %v305 = vpop.f32.mrb[0].mxu0
  %v306 = vpop.f32.mrb[0].mxu0
  %v307 = vadd.f32 0.0, %v306
  %v308 = vpop.f32.mrb[0].mxu0
  %309 = vdwg.mxu0
  %311 = vrot.lane.b32.xlu0 %v137, 120
  %v312 = vpop.permute.xlu0 %311
  %v314 = vsel %vm145, %v312, 0
  %316 = vmatprep.subr.bf16.mxu0 0
  %317 = vmatpush1.bf16.msra.mxu0 %v198
  %318 = vmatprep.subr.bf16.mxu0 0
  %319 = vmatpush1.bf16.msra.mxu0 0
  %320 = vmatprep.subr.bf16.mxu0 0
  %321 = vmatpush1.bf16.msra.mxu0 0
  %322 = vmatprep.subr.bf16.mxu0 0
  %323 = vmatpush1.bf16.msra.mxu0 0
  %324 = vmatprep.subr.bf16.mxu0 0
  %325 = vmatpush1.bf16.msra.mxu0 0
  %326 = vmatprep.subr.bf16.mxu0 0
  %327 = vmatpush1.bf16.msra.mxu0 0
  %328 = vmatprep.subr.bf16.mxu0 0
  %329 = vmatpush1.bf16.msra.mxu0 0
  %330 = vmatprep.subr.bf16.mxu0 0
  %331 = vmatpush1.bf16.msra.mxu0 0
  %332 = vmatprep.subr.bf16.mxu0 0
  %333 = vmatpush1.bf16.msra.mxu0 0
  %334 = vmatprep.subr.bf16.mxu0 0
  %335 = vmatpush1.bf16.msra.mxu0 0
  %336 = vmatprep.subr.bf16.mxu0 0
  %337 = vmatpush1.bf16.msra.mxu0 0
  %338 = vmatprep.subr.bf16.mxu0 0
  %339 = vmatpush1.bf16.msra.mxu0 0
  %340 = vmatprep.subr.bf16.mxu0 0
  %341 = vmatpush1.bf16.msra.mxu0 0
  %342 = vmatprep.subr.bf16.mxu0 0
  %343 = vmatpush1.bf16.msra.mxu0 0
  %344 = vmatprep.subr.bf16.mxu0 0
  %345 = vmatpush1.bf16.msra.mxu0 0
  %346 = vmatprep.subr.bf16.mxu0 0
  %347 = vmatpush1.bf16.msra.mxu0 0
  %348 = vmatprep.mubr.bf16.mxu0 0
  %349 = vmatmul.mubr.bf16.gmra.mrb[0].mxu0 %v314
  %v350 = vpop.f32.mrb[0].mxu0
  %v351 = vadd.f32 %v304, %v350
  %v352 = vpop.f32.mrb[0].mxu0
  %v353 = vpop.f32.mrb[0].mxu0
  %v354 = vadd.f32 %v307, %v353
  %v355 = vpop.f32.mrb[0].mxu0
  %356 = vdwg.mxu0
  %v357 = vadd.f32 %v351, %v245
  %v358 = vadd.f32 %v354, %v245
  %v359 = vxor.u32 %v357, 2147483648
  %v360 = vxor.u32 %v358, 2147483648
  %v361 = vmul.f32 %v359, 1.442695
  %v362 = vpow.pop %v361
  %v363 = vmul.f32 %v360, 1.442695
  %v364 = vpow.pop %v363
  %v365 = vadd.f32 %v362, 1.0
  %v366 = vadd.f32 %v364, 1.0
  %v367 = vrcp.pop %v365
  %v368 = vmul.f32 1.0, %v367
  %v369 = vrcp.pop %v366
  %v370 = vmul.f32 1.0, %v369
  %373 = vrot.lane.b32.xlu0 %v37, 120
  %v374 = vpop.permute.xlu0 %373
  %375 = vrot.lane.b32.xlu0 %v38, 120
  %v376 = vpop.permute.xlu0 %375
  %v379 = vmul.f32 %v368, %v374
  %v380 = vmul.f32 %v370, %v376
  %383 = vrot.lane.b32.xlu0 %v379, 8
  %v384 = vpop.permute.xlu0 %383
  %385 = vrot.lane.b32.xlu0 %v380, 8
  %v386 = vpop.permute.xlu0 %385
  %v389 = vsel %vm145, %v261, %v384
  %v390 = vsel %vm145, %v262, %v386
  %v391 = vpack.c.bf16 %v390, %v389
  %392 = vmatprep.subr.bf16.mxu0 0
  %393 = vmatpush1.bf16.msra.mxu0 %v391
  %394 = vmatprep.subr.bf16.mxu0 0
  %395 = vmatpush1.bf16.msra.mxu0 0
  %396 = vmatprep.subr.bf16.mxu0 0
  %397 = vmatpush1.bf16.msra.mxu0 0
  %398 = vmatprep.subr.bf16.mxu0 0
  %399 = vmatpush1.bf16.msra.mxu0 0
  %400 = vmatprep.subr.bf16.mxu0 0
  %401 = vmatpush1.bf16.msra.mxu0 0
  %402 = vmatprep.subr.bf16.mxu0 0
  %403 = vmatpush1.bf16.msra.mxu0 0
  %404 = vmatprep.subr.bf16.mxu0 0
  %405 = vmatpush1.bf16.msra.mxu0 0
  %406 = vmatprep.subr.bf16.mxu0 0
  %407 = vmatpush1.bf16.msra.mxu0 0
  %408 = vmatprep.subr.bf16.mxu0 0
  %409 = vmatpush1.bf16.msra.mxu0 0
  %410 = vmatprep.subr.bf16.mxu0 0
  %411 = vmatpush1.bf16.msra.mxu0 0
  %412 = vmatprep.subr.bf16.mxu0 0
  %413 = vmatpush1.bf16.msra.mxu0 0
  %414 = vmatprep.subr.bf16.mxu0 0
  %415 = vmatpush1.bf16.msra.mxu0 0
  %416 = vmatprep.subr.bf16.mxu0 0
  %417 = vmatpush1.bf16.msra.mxu0 0
  %418 = vmatprep.subr.bf16.mxu0 0
  %419 = vmatpush1.bf16.msra.mxu0 0
  %420 = vmatprep.subr.bf16.mxu0 0
  %421 = vmatpush1.bf16.msra.mxu0 0
  %422 = vmatprep.subr.bf16.mxu0 0
  %423 = vmatpush1.bf16.msra.mxu0 0
  %424 = vmatprep.mubr.bf16.mxu0 0
  %425 = vmatmul.mubr.bf16.gmra.mrb[0].mxu0 %v52
  %v426 = vpop.f32.mrb[0].mxu0
  %v427 = vadd.f32 0.0, %v426
  %v428 = vpop.f32.mrb[0].mxu0
  %v429 = vpop.f32.mrb[0].mxu0
  %v430 = vadd.f32 0.0, %v429
  %v431 = vpop.f32.mrb[0].mxu0
  %432 = vdwg.mxu0
  %v433 = vpack.c.bf16 %v430, %v427
  %v435 = vsel %vm145, %v433, 0
  %v438 = vsel %vm149, %v142, 0
  %440 = vmatprep.subr.bf16.mxu0 0
  %441 = vmatpush1.bf16.msra.mxu0 %v438
  %442 = vmatprep.subr.bf16.mxu0 0
  %443 = vmatpush1.bf16.msra.mxu0 0
  %444 = vmatprep.subr.bf16.mxu0 0
  %445 = vmatpush1.bf16.msra.mxu0 0
  %446 = vmatprep.subr.bf16.mxu0 0
  %447 = vmatpush1.bf16.msra.mxu0 0
  %448 = vmatprep.subr.bf16.mxu0 0
  %449 = vmatpush1.bf16.msra.mxu0 0
  %450 = vmatprep.subr.bf16.mxu0 0
  %451 = vmatpush1.bf16.msra.mxu0 0
  %452 = vmatprep.subr.bf16.mxu0 0
  %453 = vmatpush1.bf16.msra.mxu0 0
  %454 = vmatprep.subr.bf16.mxu0 0
  %455 = vmatpush1.bf16.msra.mxu0 0
  %456 = vmatprep.subr.bf16.mxu0 0
  %457 = vmatpush1.bf16.msra.mxu0 0
  %458 = vmatprep.subr.bf16.mxu0 0
  %459 = vmatpush1.bf16.msra.mxu0 0
  %460 = vmatprep.subr.bf16.mxu0 0
  %461 = vmatpush1.bf16.msra.mxu0 0
  %462 = vmatprep.subr.bf16.mxu0 0
  %463 = vmatpush1.bf16.msra.mxu0 0
  %464 = vmatprep.subr.bf16.mxu0 0
  %465 = vmatpush1.bf16.msra.mxu0 0
  %466 = vmatprep.subr.bf16.mxu0 0
  %467 = vmatpush1.bf16.msra.mxu0 0
  %468 = vmatprep.subr.bf16.mxu0 0
  %469 = vmatpush1.bf16.msra.mxu0 0
  %470 = vmatprep.subr.bf16.mxu0 0
  %471 = vmatpush1.bf16.msra.mxu0 0
  %472 = vmatprep.mubr.bf16.mxu0 0
  %473 = vmatmul.mubr.bf16.gmra.mrb[0].mxu0 %v435
  %v474 = vpop.f32.mrb[0].mxu0
  %v475 = vadd.f32 0.0, %v474
  %v476 = vpop.f32.mrb[0].mxu0
  %v477 = vpop.f32.mrb[0].mxu0
  %v478 = vadd.f32 0.0, %v477
  %v479 = vpop.f32.mrb[0].mxu0
  %480 = vdwg.mxu0
  %v482 = vsel %vm149, %v141, 0
  %484 = vmatprep.subr.bf16.mxu0 0
  %485 = vmatpush1.bf16.msra.mxu0 %v482
  %486 = vmatprep.subr.bf16.mxu0 0
  %487 = vmatpush1.bf16.msra.mxu0 0
  %488 = vmatprep.subr.bf16.mxu0 0
  %489 = vmatpush1.bf16.msra.mxu0 0
  %490 = vmatprep.subr.bf16.mxu0 0
  %491 = vmatpush1.bf16.msra.mxu0 0
  %492 = vmatprep.subr.bf16.mxu0 0
  %493 = vmatpush1.bf16.msra.mxu0 0
  %494 = vmatprep.subr.bf16.mxu0 0
  %495 = vmatpush1.bf16.msra.mxu0 0
  %496 = vmatprep.subr.bf16.mxu0 0
  %497 = vmatpush1.bf16.msra.mxu0 0
  %498 = vmatprep.subr.bf16.mxu0 0
  %499 = vmatpush1.bf16.msra.mxu0 0
  %500 = vmatprep.subr.bf16.mxu0 0
  %501 = vmatpush1.bf16.msra.mxu0 0
  %502 = vmatprep.subr.bf16.mxu0 0
  %503 = vmatpush1.bf16.msra.mxu0 0
  %504 = vmatprep.subr.bf16.mxu0 0
  %505 = vmatpush1.bf16.msra.mxu0 0
  %506 = vmatprep.subr.bf16.mxu0 0
  %507 = vmatpush1.bf16.msra.mxu0 0
  %508 = vmatprep.subr.bf16.mxu0 0
  %509 = vmatpush1.bf16.msra.mxu0 0
  %510 = vmatprep.subr.bf16.mxu0 0
  %511 = vmatpush1.bf16.msra.mxu0 0
  %512 = vmatprep.subr.bf16.mxu0 0
  %513 = vmatpush1.bf16.msra.mxu0 0
  %514 = vmatprep.subr.bf16.mxu0 0
  %515 = vmatpush1.bf16.msra.mxu0 0
  %516 = vmatprep.mubr.bf16.mxu0 0
  %517 = vmatmul.mubr.bf16.gmra.mrb[0].mxu0 %v195
  %v518 = vpop.f32.mrb[0].mxu0
  %v519 = vadd.f32 %v475, %v518
  %v520 = vpop.f32.mrb[0].mxu0
  %v521 = vpop.f32.mrb[0].mxu0
  %v522 = vadd.f32 %v478, %v521
  %v523 = vpop.f32.mrb[0].mxu0
  %524 = vdwg.mxu0
  %v526 = vlaneseq
  %v527 = vshrl.u32 %v526, 7
  %v528 = vsub.s32 0, %v527
  %v529 = vrot.slane %v144, %v528
  %v531 = vadd.f32 %v519, %v529
  %v532 = vadd.f32 %v522, %v529
  %v533 = vtanh.pop %v531
  %v534 = vtanh.pop %v532
  %535 = vrot.lane.b32.xlu0 %v37, 8
  %v536 = vpop.permute.xlu0 %535
  %537 = vrot.lane.b32.xlu0 %v38, 8
  %v538 = vpop.permute.xlu0 %537
  %v541 = vmul.f32 %v258, %v536
  %v542 = vmul.f32 %v260, %v538
  %v543 = vsub.f32 1.0, %v258
  %v544 = vsub.f32 1.0, %v260
  %547 = vrot.lane.b32.xlu0 %v533, 8
  %v548 = vpop.permute.xlu0 %547
  %549 = vrot.lane.b32.xlu0 %v534, 8
  %v550 = vpop.permute.xlu0 %549
  %v553 = vmul.f32 %v543, %v548
  %v554 = vmul.f32 %v544, %v550
  %v555 = vadd.f32 %v541, %v553
  %v556 = vadd.f32 %v542, %v554
  %558 = vrot.lane.b32.xlu0 %v433, 120
  %v559 = vpop.permute.xlu0 %558
  %v561 = vsel %vm145, %v559, 0
  %563 = vmatprep.subr.bf16.mxu0 0
  %564 = vmatpush1.bf16.msra.mxu0 %v438
  %565 = vmatprep.subr.bf16.mxu0 0
  %566 = vmatpush1.bf16.msra.mxu0 0
  %567 = vmatprep.subr.bf16.mxu0 0
  %568 = vmatpush1.bf16.msra.mxu0 0
  %569 = vmatprep.subr.bf16.mxu0 0
  %570 = vmatpush1.bf16.msra.mxu0 0
  %571 = vmatprep.subr.bf16.mxu0 0
  %572 = vmatpush1.bf16.msra.mxu0 0
  %573 = vmatprep.subr.bf16.mxu0 0
  %574 = vmatpush1.bf16.msra.mxu0 0
  %575 = vmatprep.subr.bf16.mxu0 0
  %576 = vmatpush1.bf16.msra.mxu0 0
  %577 = vmatprep.subr.bf16.mxu0 0
  %578 = vmatpush1.bf16.msra.mxu0 0
  %579 = vmatprep.subr.bf16.mxu0 0
  %580 = vmatpush1.bf16.msra.mxu0 0
  %581 = vmatprep.subr.bf16.mxu0 0
  %582 = vmatpush1.bf16.msra.mxu0 0
  %583 = vmatprep.subr.bf16.mxu0 0
  %584 = vmatpush1.bf16.msra.mxu0 0
  %585 = vmatprep.subr.bf16.mxu0 0
  %586 = vmatpush1.bf16.msra.mxu0 0
  %587 = vmatprep.subr.bf16.mxu0 0
  %588 = vmatpush1.bf16.msra.mxu0 0
  %589 = vmatprep.subr.bf16.mxu0 0
  %590 = vmatpush1.bf16.msra.mxu0 0
  %591 = vmatprep.subr.bf16.mxu0 0
  %592 = vmatpush1.bf16.msra.mxu0 0
  %593 = vmatprep.subr.bf16.mxu0 0
  %594 = vmatpush1.bf16.msra.mxu0 0
  %595 = vmatprep.mubr.bf16.mxu0 0
  %596 = vmatmul.mubr.bf16.gmra.mrb[0].mxu0 %v561
  %v597 = vpop.f32.mrb[0].mxu0
  %v598 = vadd.f32 0.0, %v597
  %v599 = vpop.f32.mrb[0].mxu0
  %v600 = vpop.f32.mrb[0].mxu0
  %v601 = vadd.f32 0.0, %v600
  %v602 = vpop.f32.mrb[0].mxu0
  %603 = vdwg.mxu0
  %604 = vmatprep.subr.bf16.mxu0 0
  %605 = vmatpush1.bf16.msra.mxu0 %v482
  %606 = vmatprep.subr.bf16.mxu0 0
  %607 = vmatpush1.bf16.msra.mxu0 0
  %608 = vmatprep.subr.bf16.mxu0 0
  %609 = vmatpush1.bf16.msra.mxu0 0
  %610 = vmatprep.subr.bf16.mxu0 0
  %611 = vmatpush1.bf16.msra.mxu0 0
  %612 = vmatprep.subr.bf16.mxu0 0
  %613 = vmatpush1.bf16.msra.mxu0 0
  %614 = vmatprep.subr.bf16.mxu0 0
  %615 = vmatpush1.bf16.msra.mxu0 0
  %616 = vmatprep.subr.bf16.mxu0 0
  %617 = vmatpush1.bf16.msra.mxu0 0
  %618 = vmatprep.subr.bf16.mxu0 0
  %619 = vmatpush1.bf16.msra.mxu0 0
  %620 = vmatprep.subr.bf16.mxu0 0
  %621 = vmatpush1.bf16.msra.mxu0 0
  %622 = vmatprep.subr.bf16.mxu0 0
  %623 = vmatpush1.bf16.msra.mxu0 0
  %624 = vmatprep.subr.bf16.mxu0 0
  %625 = vmatpush1.bf16.msra.mxu0 0
  %626 = vmatprep.subr.bf16.mxu0 0
  %627 = vmatpush1.bf16.msra.mxu0 0
  %628 = vmatprep.subr.bf16.mxu0 0
  %629 = vmatpush1.bf16.msra.mxu0 0
  %630 = vmatprep.subr.bf16.mxu0 0
  %631 = vmatpush1.bf16.msra.mxu0 0
  %632 = vmatprep.subr.bf16.mxu0 0
  %633 = vmatpush1.bf16.msra.mxu0 0
  %634 = vmatprep.subr.bf16.mxu0 0
  %635 = vmatpush1.bf16.msra.mxu0 0
  %636 = vmatprep.mubr.bf16.mxu0 0
  %637 = vmatmul.mubr.bf16.gmra.mrb[0].mxu0 %v314
  %v638 = vpop.f32.mrb[0].mxu0
  %v639 = vadd.f32 %v598, %v638
  %v640 = vpop.f32.mrb[0].mxu0
  %v641 = vpop.f32.mrb[0].mxu0
  %v642 = vadd.f32 %v601, %v641
  %v643 = vpop.f32.mrb[0].mxu0
  %644 = vdwg.mxu0
  %v645 = vadd.f32 %v639, %v529
  %v646 = vadd.f32 %v642, %v529
  %v647 = vtanh.pop %v645
  %v648 = vtanh.pop %v646
  %v649 = vmul.f32 %v368, %v37
  %v650 = vmul.f32 %v370, %v38
  %v651 = vsub.f32 1.0, %v368
  %v652 = vsub.f32 1.0, %v370
  %655 = vrot.lane.b32.xlu0 %v647, 8
  %v656 = vpop.permute.xlu0 %655
  %657 = vrot.lane.b32.xlu0 %v648, 8
  %v658 = vpop.permute.xlu0 %657
  %v661 = vmul.f32 %v651, %v656
  %v662 = vmul.f32 %v652, %v658
  %v663 = vadd.f32 %v649, %v661
  %v664 = vadd.f32 %v650, %v662
  %667 = vrot.lane.b32.xlu0 %v555, 120
  %v668 = vpop.permute.xlu0 %667
  %669 = vrot.lane.b32.xlu0 %v556, 120
  %v670 = vpop.permute.xlu0 %669
  %v673 = vsel %vm145, %v668, %v663
  %v674 = vsel %vm145, %v670, %v664
  %675 = vst.msk [vmem:[%s9] sm:$0xff] %vm50, %v673
  %676 = vst.msk [vmem:[%s9 + $0x8] sm:$0xff] %vm50, %v674
  // Predicated region
  $region38: #{tgcn_cell_forward.1} parent=0 // pred_check
    _
  $region39: #{tgcn_cell_forward.1} parent=0 // pred_check_branch
    %678 = sbr.rel (0) target = $region41
  $region40: #{tgcn_cell_forward.1} parent=0 // pred_region
    _
  $region41: #{tgcn_cell_forward.1} parent=0 // pred_fallthru
    _
  // Predicated region
  $region42: #{tgcn_cell_forward.1} parent=0 // pred_check
    _
  $region43: #{tgcn_cell_forward.1} parent=0 // pred_check_branch
    %680 = sbr.rel (0) target = $region45
  $region44: #{tgcn_cell_forward.1} parent=0 // pred_region
    _
  $region45: #{tgcn_cell_forward.1} parent=0 // pred_fallthru
    _

</llo_original>
